<compile_context>
chip_gen: v7x
topology: tpu7x:2x2x1
jax: 0.10.0
libtpu: 0.0.40
codegen_flags: <defaults>
</compile_context>

<pallas_src>
import functools

import jax
import jax.numpy as jnp
from jax import lax
from jax.experimental import pallas as pl
from jax.experimental.pallas import tpu as pltpu


def _round_up(x, m):
    return ((x + m - 1) // m) * m


def _divisor_tile(total, target):
    """Largest multiple of 8 that divides `total` and is <= max(target, 8)."""
    t = min(max(8, (target // 8) * 8), total)
    while t > 8 and total % t != 0:
        t -= 8
    if total % t != 0:
        t = total  # total is always a multiple of 8 here
    return t


# ----------------------------- pass 1: normalize -----------------------------


def _normalize_kernel(ei_ref, ej_ref, zi_ref, zj_ref, pos_ref, si_ref, sj_ref,
                      *, inv_sqrt_t, eps):
    ei = ei_ref[...].astype(jnp.float32)
    ej = ej_ref[...].astype(jnp.float32)
    # F.normalize(x, dim=1): x / max(||x||, eps) == x * rsqrt(max(||x||^2, eps^2))
    inv_i = lax.rsqrt(jnp.maximum(jnp.sum(ei * ei, axis=1, keepdims=True), eps * eps))
    inv_j = lax.rsqrt(jnp.maximum(jnp.sum(ej * ej, axis=1, keepdims=True), eps * eps))
    # Fold 1/sqrt(T) into both operands so the pass-2 matmul produces sim / T.
    zi = ei * (inv_i * inv_sqrt_t)
    zj = ej * (inv_j * inv_sqrt_t)
    pos_ref[...] = jnp.sum(zi * zj, axis=1, keepdims=True)  # <z_i, z_j> / T
    si_ref[...] = jnp.sum(zi * zi, axis=1, keepdims=True)   # <z_i, z_i> / T
    sj_ref[...] = jnp.sum(zj * zj, axis=1, keepdims=True)   # <z_j, z_j> / T
    zi_ref[...] = zi.astype(zi_ref.dtype)
    zj_ref[...] = zj.astype(zj_ref.dtype)


# --------------------- pass 2: tiled similarity reduction --------------------


def _simclr_tile_kernel(zr_ref, zc_ref, pos_ref, self_ref, loss_ref,
                        *, batch, batch_pad, col_tile):
    # Grid queries hoisted to the top level of the kernel body (never inside
    # pl.when closures).
    j = pl.program_id(1)
    nj = pl.num_programs(1)

    @pl.when(j == 0)
    def _init():
        loss_ref[...] = jnp.zeros_like(loss_ref)

    # (TR, TC) block of sim / T: contract the feature axis of both operands
    # directly (no materialized transpose); bf16 operands, f32 accumulation.
    s = lax.dot_general(
        zr_ref[...], zc_ref[...],
        dimension_numbers=(((1,), (1,)), ((), ())),
        preferred_element_type=jnp.float32,
    )
    e = jnp.exp(s)

    if batch != batch_pad:  # mask out zero-padded columns (trace-time branch)
        col = j * col_tile + lax.broadcasted_iota(jnp.int32, e.shape, 1)
        col_valid = (col < batch) | ((col >= batch_pad) & (col < batch_pad + batch))
        e = jnp.where(col_valid, e, 0.0)

    loss_ref[...] += jnp.sum(e, axis=1, keepdims=True)

    @pl.when(j == nj - 1)
    def _finalize():
        # denominator_r = sum_{c != r} exp(sim_rc / T)  (drop the self term)
        denom = loss_ref[...] - jnp.exp(self_ref[...])
        # -log(exp(pos/T) / denom) == log(denom) - pos/T
        loss_ref[...] = jnp.log(denom) - pos_ref[...]


# --------------------------------- wrapper -----------------------------------


def simclr_contrastive_loss(emb_i, emb_j, *, temperature=0.5,
                            matmul_dtype=jnp.bfloat16,
                            row_tile=256, col_tile=512):
    assert emb_i.shape == emb_j.shape and emb_i.ndim == 2
    batch, dim = emb_i.shape
    n = 2 * batch
    temperature = float(temperature)

    b_pad = _round_up(batch, 8)
    d_pad = _round_up(dim, 128)
    n_pad = 2 * b_pad

    tb = _divisor_tile(b_pad, row_tile)
    tr = _divisor_tile(n_pad, row_tile)
    tc = _divisor_tile(n_pad, col_tile)

    def pad(x):
        return jnp.pad(x.astype(jnp.float32),
                       ((0, b_pad - batch), (0, d_pad - dim)))

    ei = pad(emb_i)
    ej = pad(emb_j)

    # ---- pass 1: normalize + fold 1/sqrt(T) + per-row positive / self terms ----
    norm_kernel = functools.partial(
        _normalize_kernel, inv_sqrt_t=1.0 / (temperature ** 0.5), eps=1e-12)
    zi, zj, pos, si, sj = pl.pallas_call(
        norm_kernel,
        out_shape=(
            jax.ShapeDtypeStruct((b_pad, d_pad), matmul_dtype),
            jax.ShapeDtypeStruct((b_pad, d_pad), matmul_dtype),
            jax.ShapeDtypeStruct((b_pad, 1), jnp.float32),
            jax.ShapeDtypeStruct((b_pad, 1), jnp.float32),
            jax.ShapeDtypeStruct((b_pad, 1), jnp.float32),
        ),
        grid=(b_pad // tb,),
        in_specs=[
            pl.BlockSpec((tb, d_pad), lambda i: (i, 0)),
            pl.BlockSpec((tb, d_pad), lambda i: (i, 0)),
        ],
        out_specs=(
            pl.BlockSpec((tb, d_pad), lambda i: (i, 0)),
            pl.BlockSpec((tb, d_pad), lambda i: (i, 0)),
            pl.BlockSpec((tb, 1), lambda i: (i, 0)),
            pl.BlockSpec((tb, 1), lambda i: (i, 0)),
            pl.BlockSpec((tb, 1), lambda i: (i, 0)),
        ),
        compiler_params=pltpu.CompilerParams(dimension_semantics=("parallel",)),
    )(ei, ej)

    # Cheap O(n*D) host-level assembly of the concatenated operands.
    zs = jnp.concatenate([zi, zj], axis=0)            # (n_pad, d_pad)
    pos_all = jnp.concatenate([pos, pos], axis=0)     # (n_pad, 1), already / T
    self_all = jnp.concatenate([si, sj], axis=0)      # (n_pad, 1), already / T

    # ---- pass 2: flash-style tiled reduction over the (n_pad, n_pad) matrix ----
    tile_kernel = functools.partial(
        _simclr_tile_kernel, batch=batch, batch_pad=b_pad, col_tile=tc)
    loss_rows = pl.pallas_call(
        tile_kernel,
        out_shape=jax.ShapeDtypeStruct((n_pad, 1), jnp.float32),
        grid=(n_pad // tr, n_pad // tc),
        in_specs=[
            pl.BlockSpec((tr, d_pad), lambda i, j: (i, 0)),   # query rows
            pl.BlockSpec((tc, d_pad), lambda i, j: (j, 0)),   # key rows
            pl.BlockSpec((tr, 1), lambda i, j: (i, 0)),       # pos / T
            pl.BlockSpec((tr, 1), lambda i, j: (i, 0)),       # self / T
        ],
        out_specs=pl.BlockSpec((tr, 1), lambda i, j: (i, 0)),
        compiler_params=pltpu.CompilerParams(
            dimension_semantics=("parallel", "arbitrary")),
    )(zs, zs, pos_all, self_all)

    # Final scalar mean over the 2B valid rows.  Padded rows (if any) are
    # dropped here on the host; no grid queries needed inside pl.when.
    if batch == b_pad:
        return jnp.sum(loss_rows) / n
    valid = jnp.concatenate(
        [loss_rows[:batch], loss_rows[b_pad:b_pad + batch]], axis=0)
    return jnp.sum(valid) / n


# ------------------------------- reference -----------------------------------


def _reference_loss(emb_i, emb_j, temperature=0.5):
    """Pure-JAX reference mirroring the PyTorch module."""
    eps = 1e-12
    b = emb_i.shape[0]
    n = 2 * b
    z_i = emb_i / jnp.maximum(jnp.linalg.norm(emb_i, axis=1, keepdims=True), eps)
    z_j = emb_j / jnp.maximum(jnp.linalg.norm(emb_j, axis=1, keepdims=True), eps)
    z = jnp.concatenate([z_i, z_j], axis=0)
    sim = z @ z.T
    sim_ij = jnp.diagonal(sim, offset=b)
    sim_ji = jnp.diagonal(sim, offset=-b)
    positives = jnp.concatenate([sim_ij, sim_ji], axis=0)
    nominator = jnp.exp(positives / temperature)
    neg_mask = 1.0 - jnp.eye(n)
    denominator = jnp.sum(neg_mask * jnp.exp(sim / temperature), axis=1)
    loss_partial = -jnp.log(nominator / denominator)
    return jnp.sum(loss_partial) / n


if __name__ == "__main__":
    batch_size, dim, temperature = 4, 32, 0.5

    key = jax.random.PRNGKey(0)
    k1, k2 = jax.random.split(key)
    emb_i = jax.random.normal(k1, (batch_size, dim), dtype=jnp.float32)
    emb_j = jax.random.normal(k2, (batch_size, dim), dtype=jnp.float32)

    ref = _reference_loss(emb_i, emb_j, temperature)

    # f32 MXU path: tight tolerance vs the f32 reference.
    loss_f32 = jax.block_until_ready(
        simclr_contrastive_loss(emb_i, emb_j, temperature=temperature,
                                matmul_dtype=jnp.float32))
    assert jnp.allclose(loss_f32, ref, atol=1e-5, rtol=1e-5), (loss_f32, ref)

    # Default bf16-operand MXU path: looser tolerance (bf16 similarity matmul).
    loss_bf16 = jax.block_until_ready(
        simclr_contrastive_loss(emb_i, emb_j, temperature=temperature))
    assert jnp.allclose(loss_bf16, ref, atol=5e-2, rtol=5e-2), (loss_bf16, ref)

    print("KERNEL_OK")
</pallas_src>

<mosaic_0001>
module attributes {stable_mosaic.version = 11 : i64} {
  func.func @_normalize_kernel(%arg0: i32, %arg1: memref<8x128xf32, #tpu.memory_space<vmem>>, %arg2: memref<8x128xf32, #tpu.memory_space<vmem>>, %arg3: memref<8x128xf32, #tpu.memory_space<vmem>>, %arg4: memref<8x128xf32, #tpu.memory_space<vmem>>, %arg5: memref<8x1xf32, #tpu.memory_space<vmem>>, %arg6: memref<8x1xf32, #tpu.memory_space<vmem>>, %arg7: memref<8x1xf32, #tpu.memory_space<vmem>>) attributes {dimension_semantics = [#tpu.dimension_semantics<parallel>], iteration_bounds = array<i64: 1>, scalar_prefetch = 0 : i64, scratch_operands = 0 : i64, tpu.core_type = #tpu.core_type<tc>, window_params = [{transform_indices = @transform_0, window_bounds = array<i64: 8, 128>}, {transform_indices = @transform_1, window_bounds = array<i64: 8, 128>}, {transform_indices = @transform_2, window_bounds = array<i64: 8, 128>}, {transform_indices = @transform_3, window_bounds = array<i64: 8, 128>}, {transform_indices = @transform_4, window_bounds = array<i64: 8, 1>}, {transform_indices = @transform_5, window_bounds = array<i64: 8, 1>}, {transform_indices = @transform_6, window_bounds = array<i64: 8, 1>}]} {
    %c0 = arith.constant 0 : index
    %c0_0 = arith.constant 0 : index
    %0 = vector.load %arg1[%c0, %c0_0] : memref<8x128xf32, #tpu.memory_space<vmem>>, vector<8x128xf32>
    %c0_1 = arith.constant 0 : index
    %c0_2 = arith.constant 0 : index
    %1 = vector.load %arg2[%c0_1, %c0_2] : memref<8x128xf32, #tpu.memory_space<vmem>>, vector<8x128xf32>
    %2 = arith.mulf %0, %0 : vector<8x128xf32>
    %cst = arith.constant dense<0.000000e+00> : vector<8xf32>
    %3 = vector.multi_reduction <add>, %2, %cst [1] : vector<8x128xf32> to vector<8xf32>
    %4 = vector.shape_cast %3 : vector<8xf32> to vector<8x1xf32>
    %cst_3 = arith.constant 1.000000e-24 : f32
    %5 = vector.broadcast %cst_3 : f32 to vector<8x1xf32>
    %6 = arith.maximumf %4, %5 : vector<8x1xf32>
    %7 = math.rsqrt %6 : vector<8x1xf32>
    %8 = arith.mulf %1, %1 : vector<8x128xf32>
    %cst_4 = arith.constant dense<0.000000e+00> : vector<8xf32>
    %9 = vector.multi_reduction <add>, %8, %cst_4 [1] : vector<8x128xf32> to vector<8xf32>
    %10 = vector.shape_cast %9 : vector<8xf32> to vector<8x1xf32>
    %cst_5 = arith.constant 1.000000e-24 : f32
    %11 = vector.broadcast %cst_5 : f32 to vector<8x1xf32>
    %12 = arith.maximumf %10, %11 : vector<8x1xf32>
    %13 = math.rsqrt %12 : vector<8x1xf32>
    %cst_6 = arith.constant 1.41421354 : f32
    %14 = vector.broadcast %cst_6 : f32 to vector<8x1xf32>
    %15 = arith.mulf %7, %14 : vector<8x1xf32>
    %16 = vector.broadcast %15 : vector<8x1xf32> to vector<8x128xf32>
    %17 = arith.mulf %0, %16 : vector<8x128xf32>
    %cst_7 = arith.constant 1.41421354 : f32
    %18 = vector.broadcast %cst_7 : f32 to vector<8x1xf32>
    %19 = arith.mulf %13, %18 : vector<8x1xf32>
    %20 = vector.broadcast %19 : vector<8x1xf32> to vector<8x128xf32>
    %21 = arith.mulf %1, %20 : vector<8x128xf32>
    %22 = arith.mulf %17, %21 : vector<8x128xf32>
    %cst_8 = arith.constant dense<0.000000e+00> : vector<8xf32>
    %23 = vector.multi_reduction <add>, %22, %cst_8 [1] : vector<8x128xf32> to vector<8xf32>
    %24 = vector.shape_cast %23 : vector<8xf32> to vector<8x1xf32>
    %c0_9 = arith.constant 0 : index
    %c0_10 = arith.constant 0 : index
    %25 = vector.load %arg5[%c0_9, %c0_10] : memref<8x1xf32, #tpu.memory_space<vmem>>, vector<8x1xf32>
    tpu.vector_store %arg5[%c0_9, %c0_10], %24 {strides = array<i32>} : memref<8x1xf32, #tpu.memory_space<vmem>>, vector<8x1xf32>,
    %26 = arith.mulf %17, %17 : vector<8x128xf32>
    %cst_11 = arith.constant dense<0.000000e+00> : vector<8xf32>
    %27 = vector.multi_reduction <add>, %26, %cst_11 [1] : vector<8x128xf32> to vector<8xf32>
    %28 = vector.shape_cast %27 : vector<8xf32> to vector<8x1xf32>
    %c0_12 = arith.constant 0 : index
    %c0_13 = arith.constant 0 : index
    %29 = vector.load %arg6[%c0_12, %c0_13] : memref<8x1xf32, #tpu.memory_space<vmem>>, vector<8x1xf32>
    tpu.vector_store %arg6[%c0_12, %c0_13], %28 {strides = array<i32>} : memref<8x1xf32, #tpu.memory_space<vmem>>, vector<8x1xf32>,
    %30 = arith.mulf %21, %21 : vector<8x128xf32>
    %cst_14 = arith.constant dense<0.000000e+00> : vector<8xf32>
    %31 = vector.multi_reduction <add>, %30, %cst_14 [1] : vector<8x128xf32> to vector<8xf32>
    %32 = vector.shape_cast %31 : vector<8xf32> to vector<8x1xf32>
    %c0_15 = arith.constant 0 : index
    %c0_16 = arith.constant 0 : index
    %33 = vector.load %arg7[%c0_15, %c0_16] : memref<8x1xf32, #tpu.memory_space<vmem>>, vector<8x1xf32>
    tpu.vector_store %arg7[%c0_15, %c0_16], %32 {strides = array<i32>} : memref<8x1xf32, #tpu.memory_space<vmem>>, vector<8x1xf32>,
    %c0_17 = arith.constant 0 : index
    %c0_18 = arith.constant 0 : index
    %34 = vector.load %arg3[%c0_17, %c0_18] : memref<8x128xf32, #tpu.memory_space<vmem>>, vector<8x128xf32>
    tpu.vector_store %arg3[%c0_17, %c0_18], %17 {strides = array<i32>} : memref<8x128xf32, #tpu.memory_space<vmem>>, vector<8x128xf32>,
    %c0_19 = arith.constant 0 : index
    %c0_20 = arith.constant 0 : index
    %35 = vector.load %arg4[%c0_19, %c0_20] : memref<8x128xf32, #tpu.memory_space<vmem>>, vector<8x128xf32>
    tpu.vector_store %arg4[%c0_19, %c0_20], %21 {strides = array<i32>} : memref<8x128xf32, #tpu.memory_space<vmem>>, vector<8x128xf32>,
    return
  }
  func.func @transform_0(%arg0: i32) -> (i32, i32) {
    %c0_i32 = arith.constant 0 : i32
    %c0_i32_0 = arith.constant 0 : i32
    return %arg0, %c0_i32 : i32, i32
  }
  func.func @transform_1(%arg0: i32) -> (i32, i32) {
    %c0_i32 = arith.constant 0 : i32
    %c0_i32_0 = arith.constant 0 : i32
    return %arg0, %c0_i32 : i32, i32
  }
  func.func @transform_2(%arg0: i32) -> (i32, i32) {
    %c0_i32 = arith.constant 0 : i32
    %c0_i32_0 = arith.constant 0 : i32
    return %arg0, %c0_i32 : i32, i32
  }
  func.func @transform_3(%arg0: i32) -> (i32, i32) {
    %c0_i32 = arith.constant 0 : i32
    %c0_i32_0 = arith.constant 0 : i32
    return %arg0, %c0_i32 : i32, i32
  }
  func.func @transform_4(%arg0: i32) -> (i32, i32) {
    %c0_i32 = arith.constant 0 : i32
    %c0_i32_0 = arith.constant 0 : i32
    return %arg0, %c0_i32 : i32, i32
  }
  func.func @transform_5(%arg0: i32) -> (i32, i32) {
    %c0_i32 = arith.constant 0 : i32
    %c0_i32_0 = arith.constant 0 : i32
    return %arg0, %c0_i32 : i32, i32
  }
  func.func @transform_6(%arg0: i32) -> (i32, i32) {
    %c0_i32 = arith.constant 0 : i32
    %c0_i32_0 = arith.constant 0 : i32
    return %arg0, %c0_i32 : i32, i32
  }
}

</mosaic_0001>

<llo_original>
// kernel: tpu_custom_call.1
$region0: #{tpu_custom_call.1}
  #allocation0 [shape = 'u32[]', space=smem, size = 0x4, offset = 0x4, fixed_abs, tag = 'smem constant byte address 0x4 - core index']
  #allocation1 [shape = 'u32[144,128]{1,0:T(1,128)}', space=vmem, size = 0x12000, scoped, tag = 'internal scratch']
  %s0 = inlined_call_operand.hbm [shape: f32[8,128], index: 0, kind: input, shape index: {}]
  %s1 = inlined_call_operand.hbm [shape: f32[8,128], index: 1, kind: input, shape index: {}]
  %s2 = inlined_call_operand.hbm [shape: f32[8,128], index: 2, kind: output, shape index: {0}]
  %s3 = inlined_call_operand.hbm [shape: f32[8,128], index: 3, kind: output, shape index: {1}]
  %s4 = inlined_call_operand.vmem [shape: f32[8,1], index: 4, kind: output, shape index: {2}]
  %s5 = inlined_call_operand.vmem [shape: f32[8,1], index: 5, kind: output, shape index: {3}]
  %s6 = inlined_call_operand.vmem [shape: f32[8,1], index: 6, kind: output, shape index: {4}]
  %7 = xla_tuple %s2, %s3, %s4, %s5, %s6
  %s8 = sld [smem:[#allocation0]]
  $region58: #{tpu_custom_call.1} parent=0
    _
  %s10 = ssub.s32 1, %s8
  %s11 = scalar_select 0, %s10, %s8
  $region1: #{tpu_custom_call.1} parent=0
    #allocation2 [shape = 'u8[4096]{0}', space=vmem, size = 0x1000, scoped, tag = 'input window, operand 0, single buffered']
    #allocation3 [shape = 's32[1]{0}', space=sflag, size = 0x4, scoped, tag = 'scoped memory for tpu_custom_call.1']
    #allocation4 [shape = 's32[1]{0}', space=sflag, size = 0x4, scoped, tag = 'scoped memory for tpu_custom_call.1']
    #allocation5 [shape = 'u8[4096]{0}', space=vmem, size = 0x1000, scoped, tag = 'input window, operand 1, single buffered']
    #allocation6 [shape = 's32[1]{0}', space=sflag, size = 0x4, scoped, tag = 'scoped memory for tpu_custom_call.1']
    #allocation7 [shape = 'u8[4096]{0}', space=vmem, size = 0x1000, scoped, tag = 'output window, operand 0, single buffered']
    #allocation8 [shape = 'u8[4096]{0}', space=vmem, size = 0x1000, scoped, tag = 'output window, operand 1, single buffered']
    #allocation9 [shape = 's32[1]{0}', space=sflag, size = 0x4, scoped, tag = 'scoped memory for tpu_custom_call.1']
    %12 = vsyncpa [#allocation3], 0
    %13 = vsyncpa [#allocation6], 0
    %14 = vsyncpa [#allocation4], 0
    %15 = vsyncpa [#allocation9], 0
    // Predicated region
    $region2: #{tpu_custom_call.1} parent=1 // pred_check
      _
    $region3: #{tpu_custom_call.1} parent=1 // pred_check_branch
      %17 = sbr.rel (0) target = $region5
    $region4: #{tpu_custom_call.1} parent=1 // pred_region
      %s19 = ssub.s32 128, 128
      %20 = vsyncadd [#allocation3], %s19
      %s22 = sshll.u32 [#allocation2], 4
      %s23 = int_to_ptr.vmem [resolvable:$true] %s22
      %25 = dma.hbm_to_vmem [thread:$0]  %s0, 128, %s23, [#allocation3]
    $region5: #{tpu_custom_call.1} parent=1 // pred_fallthru
      _
    // Predicated region
    $region6: #{tpu_custom_call.1} parent=1 // pred_check
      _
    $region7: #{tpu_custom_call.1} parent=1 // pred_check_branch
      %27 = sbr.rel (0) target = $region9
    $region8: #{tpu_custom_call.1} parent=1 // pred_region
      %s29 = ssub.s32 128, 128
      %30 = vsyncadd [#allocation6], %s29
      %s32 = sshll.u32 [#allocation5], 4
      %s33 = int_to_ptr.vmem [resolvable:$true] %s32
      %35 = dma.hbm_to_vmem [thread:$0]  %s1, 128, %s33, [#allocation6]
    $region9: #{tpu_custom_call.1} parent=1 // pred_fallthru
      _
    // Predicated region
    $region10: #{tpu_custom_call.1} parent=1 // pred_check
      _
    $region11: #{tpu_custom_call.1} parent=1 // pred_check_branch
      %37 = sbr.rel (0) target = $region13
    $region12: #{tpu_custom_call.1} parent=1 // pred_region
      %38 = dma.done [#allocation3], 128
    $region13: #{tpu_custom_call.1} parent=1 // pred_fallthru
      _
    // Predicated region
    $region14: #{tpu_custom_call.1} parent=1 // pred_check
      _
    $region15: #{tpu_custom_call.1} parent=1 // pred_check_branch
      %40 = sbr.rel (0) target = $region17
    $region16: #{tpu_custom_call.1} parent=1 // pred_region
      %41 = dma.done [#allocation6], 128
    $region17: #{tpu_custom_call.1} parent=1 // pred_fallthru
      _
    %v42 = vld [vmem:[#allocation2] sm:$0xff]
    %v43 = vld [vmem:[#allocation5] sm:$0xff]
    %v44 = vmul.f32 %v42, %v42
    %45 = vadd.xlane.f32.xlu0 %v44
    %v46 = vpop.xlane.xlu0 %45
    %v47 = vmax.f32 %v46, 1e-24
    %v48 = vrsqrt.pop %v47
    %v49 = vmul.f32 %v43, %v43
    %50 = vadd.xlane.f32.xlu0 %v49
    %v51 = vpop.xlane.xlu0 %50
    %v52 = vmax.f32 %v51, 1e-24
    %v53 = vrsqrt.pop %v52
    %v54 = vmul.f32 %v48, 1.4142135
    %v55 = vmul.f32 %v42, %v54
    %v56 = vmul.f32 %v53, 1.4142135
    %v57 = vmul.f32 %v43, %v56
    %v58 = vmul.f32 %v55, %v57
    %59 = vadd.xlane.f32.xlu0 %v58
    %v60 = vpop.xlane.xlu0 %59
    %vm61 = vcmask 7168
    %62 = vst.msk [vmem:[%s4] sm:$0xff] %vm61, %v60
    %v63 = vmul.f32 %v55, %v55
    %64 = vadd.xlane.f32.xlu0 %v63
    %v65 = vpop.xlane.xlu0 %64
    %66 = vst.msk [vmem:[%s5] sm:$0xff] %vm61, %v65
    %v67 = vmul.f32 %v57, %v57
    %68 = vadd.xlane.f32.xlu0 %v67
    %v69 = vpop.xlane.xlu0 %68
    %70 = vst.msk [vmem:[%s6] sm:$0xff] %vm61, %v69
    %71 = vst [vmem:[#allocation7] sm:$0xff] %v55
    %72 = vst [vmem:[#allocation8] sm:$0xff] %v57
    // Predicated region
    $region18: #{tpu_custom_call.1} parent=1 // pred_check
      _
    $region19: #{tpu_custom_call.1} parent=1 // pred_check_branch
      %74 = sbr.rel (0) target = $region21
    $region20: #{tpu_custom_call.1} parent=1 // pred_region
      %s76 = ssub.s32 128, 128
      %77 = vsyncadd [#allocation4], %s76
      %s79 = sshll.u32 [#allocation7], 4
      %s80 = int_to_ptr.vmem [resolvable:$true] %s79
      %82 = dma.vmem_to_hbm [thread:$0]  %s80, 128, %s2, [#allocation4]
    $region21: #{tpu_custom_call.1} parent=1 // pred_fallthru
      _
    // Predicated region
    $region22: #{tpu_custom_call.1} parent=1 // pred_check
      _
    $region23: #{tpu_custom_call.1} parent=1 // pred_check_branch
      %84 = sbr.rel (0) target = $region25
    $region24: #{tpu_custom_call.1} parent=1 // pred_region
      %s86 = ssub.s32 128, 128
      %87 = vsyncadd [#allocation9], %s86
      %s89 = sshll.u32 [#allocation8], 4
      %s90 = int_to_ptr.vmem [resolvable:$true] %s89
      %92 = dma.vmem_to_hbm [thread:$0]  %s90, 128, %s3, [#allocation9]
    $region25: #{tpu_custom_call.1} parent=1 // pred_fallthru
      _
    // Predicated region
    $region26: #{tpu_custom_call.1} parent=1 // pred_check
      _
    $region27: #{tpu_custom_call.1} parent=1 // pred_check_branch
      %94 = sbr.rel (0) target = $region29
    $region28: #{tpu_custom_call.1} parent=1 // pred_region
      _
    $region29: #{tpu_custom_call.1} parent=1 // pred_fallthru
      _
    // Predicated region
    $region30: #{tpu_custom_call.1} parent=1 // pred_check
      _
    $region31: #{tpu_custom_call.1} parent=1 // pred_check_branch
      %96 = sbr.rel (0) target = $region33
    $region32: #{tpu_custom_call.1} parent=1 // pred_region
      _
    $region33: #{tpu_custom_call.1} parent=1 // pred_fallthru
      _
    // Predicated region
    $region34: #{tpu_custom_call.1} parent=1 // pred_check
      _
    $region35: #{tpu_custom_call.1} parent=1 // pred_check_branch
      %98 = sbr.rel (0) target = $region37
    $region36: #{tpu_custom_call.1} parent=1 // pred_region
      _
    $region37: #{tpu_custom_call.1} parent=1 // pred_fallthru
      _
    // Predicated region
    $region38: #{tpu_custom_call.1} parent=1 // pred_check
      _
    $region39: #{tpu_custom_call.1} parent=1 // pred_check_branch
      %100 = sbr.rel (0) target = $region41
    $region40: #{tpu_custom_call.1} parent=1 // pred_region
      %101 = dma.done [#allocation4], 128
    $region41: #{tpu_custom_call.1} parent=1 // pred_fallthru
      _
    // Predicated region
    $region42: #{tpu_custom_call.1} parent=1 // pred_check
      _
    $region43: #{tpu_custom_call.1} parent=1 // pred_check_branch
      %103 = sbr.rel (0) target = $region45
    $region44: #{tpu_custom_call.1} parent=1 // pred_region
      %104 = dma.done [#allocation9], 128
    $region45: #{tpu_custom_call.1} parent=1 // pred_fallthru
      _
    // Predicated region
    $region46: #{tpu_custom_call.1} parent=1 // pred_check
      _
    $region47: #{tpu_custom_call.1} parent=1 // pred_check_branch
      %106 = sbr.rel (0) target = $region49
    $region48: #{tpu_custom_call.1} parent=1 // pred_region
      _
    $region49: #{tpu_custom_call.1} parent=1 // pred_fallthru
      _
    // Predicated region
    $region50: #{tpu_custom_call.1} parent=1 // pred_check
      _
    $region51: #{tpu_custom_call.1} parent=1 // pred_check_branch
      %108 = sbr.rel (0) target = $region53
    $region52: #{tpu_custom_call.1} parent=1 // pred_region
      _
    $region53: #{tpu_custom_call.1} parent=1 // pred_fallthru
      _
    // Predicated region
    $region54: #{tpu_custom_call.1} parent=1 // pred_check
      _
    $region55: #{tpu_custom_call.1} parent=1 // pred_check_branch
      %110 = sbr.rel (0) target = $region57
    $region56: #{tpu_custom_call.1} parent=1 // pred_region
      _
    $region57: #{tpu_custom_call.1} parent=1 // pred_fallthru
      _
    %111 = vsyncpa [#allocation3], 1
    %112 = vsyncpa [#allocation6], 1
    %113 = vsyncpa [#allocation4], 1
    %114 = vsyncpa [#allocation9], 1

</llo_original>
